<compile_context>
chip_gen: v7x
topology: tpu7x:2x2x1
jax: 0.10.0
libtpu: 0.0.40
codegen_flags: <defaults>
</compile_context>

<pallas_src>
import functools

import jax
import jax.numpy as jnp
from jax.experimental import pallas as pl
from jax.experimental.pallas import tpu as pltpu


def _sublayer_connection_kernel(seed_ref, x_ref, gamma_ref, beta_ref,
                                w_ref, b_ref, o_ref, *, p, eps):
    x = x_ref[...].astype(jnp.float32)                       # [TILE_N, D]
    d = x.shape[-1]

    # ---- LayerNorm (torch semantics: unbiased std, eps added to std) ----
    mean = jnp.mean(x, axis=-1, keepdims=True)
    centered = x - mean
    var_unbiased = jnp.sum(centered * centered, axis=-1, keepdims=True) / (d - 1)
    inv = 1.0 / (jnp.sqrt(var_unbiased) + eps)                # one divide / row
    normed = gamma_ref[...] * (centered * inv) + beta_ref[...]

    # ---- sublayer: Linear(D, D) on the MXU (bf16 operands, f32 accumulate) ----
    y = jnp.dot(normed.astype(w_ref.dtype), w_ref[...],
                preferred_element_type=jnp.float32)
    y = y + b_ref[...]

    # ---- dropout (training semantics), stateless hash -> fused select ----
    if p > 0.0:
        tile_rows, cols = y.shape
        base_row = pl.program_id(0) * tile_rows
        row = base_row + jax.lax.broadcasted_iota(jnp.int32, y.shape, 0)
        col = jax.lax.broadcasted_iota(jnp.int32, y.shape, 1)
        h = seed_ref[0] * jnp.int32(-1640531527) + row * jnp.int32(cols) + col
        # murmur3-style finalizer (int32 with logical-shift emulation)
        h = h ^ ((h >> 16) & 0xFFFF)
        h = h * jnp.int32(-2048144789)   # 0x85EBCA6B
        h = h ^ ((h >> 13) & 0x7FFFF)
        h = h * jnp.int32(-1028477387)   # 0xC2B2AE35
        h = h ^ ((h >> 16) & 0xFFFF)
        r31 = h & jnp.int32(0x7FFFFFFF)                       # uniform [0, 2^31)
        threshold = jnp.int32(min(int(p * (1 << 31)), (1 << 31) - 1))
        y = jnp.where(r31 >= threshold, y * (1.0 / (1.0 - p)), 0.0)

    # ---- residual: reload x right before the add (short live range) ----
    o_ref[...] = (x_ref[...].astype(jnp.float32) + y).astype(o_ref.dtype)


def sublayer_connection(x2d, gamma, beta, w, b, seed, *, p=0.1, eps=1e-6,
                        tile_n=256):
    """x2d: [N, D] f32. gamma/beta/b: [1, D] f32. w: [D, D] f32. seed: [1] i32."""
    N, D = x2d.shape
    w_bf16 = w.astype(jnp.bfloat16)            # bf16-resident sublayer weight
    TILE_N = N if N <= tile_n else tile_n      # full dim or a multiple of 8
    grid = (pl.cdiv(N, TILE_N),)
    kernel = functools.partial(_sublayer_connection_kernel, p=p, eps=eps)

    flops = 2 * N * D * D + 10 * N * D
    bytes_accessed = (2 * N * D + 3 * D) * 4 + D * D * 2

    return pl.pallas_call(
        kernel,
        out_shape=jax.ShapeDtypeStruct((N, D), x2d.dtype),
        grid_spec=pltpu.PrefetchScalarGridSpec(
            num_scalar_prefetch=1,                               # seed -> SMEM
            grid=grid,
            in_specs=[
                pl.BlockSpec((TILE_N, D), lambda i, s: (i, 0)),  # x (row-tiled)
                pl.BlockSpec((1, D), lambda i, s: (0, 0)),       # gamma (resident)
                pl.BlockSpec((1, D), lambda i, s: (0, 0)),       # beta
                pl.BlockSpec((D, D), lambda i, s: (0, 0)),       # W (bf16, resident)
                pl.BlockSpec((1, D), lambda i, s: (0, 0)),       # b
            ],
            out_specs=pl.BlockSpec((TILE_N, D), lambda i, s: (i, 0)),
        ),
        compiler_params=pltpu.CompilerParams(
            dimension_semantics=("parallel",),
            vmem_limit_bytes=48 * 1024 * 1024),
        cost_estimate=pl.CostEstimate(
            flops=flops, transcendentals=N, bytes_accessed=bytes_accessed),
    )(seed, x2d, gamma, beta, w_bf16, b)


if __name__ == "__main__":
    # hidden is a multiple of 128 so the output stays lane-dense (unmasked vst).
    batch, seq, hidden = 2, 8, 128
    dropout_p = 0.1
    eps = 1e-6

    key = jax.random.PRNGKey(0)
    kx, kw = jax.random.split(key)

    x = jax.random.normal(kx, (batch, seq, hidden), dtype=jnp.float32)

    # LayerNorm params exactly as in __init__: gamma=ones, beta=zeros.
    gamma = jnp.ones((1, hidden), dtype=jnp.float32)
    beta = jnp.zeros((1, hidden), dtype=jnp.float32)

    # TODO(synk): `sublayer` is an arbitrary callable in the PyTorch module; it
    # is instantiated here as a deterministic Linear(hidden, hidden).
    w = (jax.random.normal(kw, (hidden, hidden), dtype=jnp.float32)
         / jnp.sqrt(jnp.float32(hidden)))
    b = jnp.zeros((1, hidden), dtype=jnp.float32)
    seed = jnp.array([0], dtype=jnp.int32)

    x2d = x.reshape(batch * seq, hidden)

    # Training-mode pass (dropout active).
    out2d = sublayer_connection(x2d, gamma, beta, w, b, seed,
                                p=dropout_p, eps=eps)
    out = out2d.reshape(batch, seq, hidden)
    jax.block_until_ready(out)
    assert bool(jnp.all(jnp.isfinite(out)))

    # Deterministic pass (dropout disabled) checked against a pure-JAX ref
    # that uses the same bf16-operand / f32-accumulate matmul.
    out_nodrop = sublayer_connection(x2d, gamma, beta, w, b, seed,
                                     p=0.0, eps=eps)
    mean = jnp.mean(x2d, axis=-1, keepdims=True)
    std = jnp.sqrt(jnp.sum((x2d - mean) ** 2, axis=-1, keepdims=True)
                   / (hidden - 1))
    normed = gamma * (x2d - mean) / (std + eps) + beta
    y_ref = jnp.dot(normed.astype(jnp.bfloat16), w.astype(jnp.bfloat16),
                    preferred_element_type=jnp.float32) + b
    ref = x2d + y_ref
    assert jnp.allclose(out_nodrop, ref, atol=1e-2, rtol=1e-2), (
        float(jnp.max(jnp.abs(out_nodrop - ref))))

    print("KERNEL_OK")
</pallas_src>

<mosaic_0001>
module attributes {stable_mosaic.version = 11 : i64} {
  func.func @_sublayer_connection_kernel(%arg0: i32, %arg1: memref<1xi32, #tpu.memory_space<smem>>, %arg2: memref<16x128xf32, #tpu.memory_space<vmem>>, %arg3: memref<1x128xf32, #tpu.memory_space<vmem>>, %arg4: memref<1x128xf32, #tpu.memory_space<vmem>>, %arg5: memref<128x128xbf16, #tpu.memory_space<vmem>>, %arg6: memref<1x128xf32, #tpu.memory_space<vmem>>, %arg7: memref<16x128xf32, #tpu.memory_space<vmem>>) attributes {dimension_semantics = [#tpu.dimension_semantics<parallel>], iteration_bounds = array<i64: 1>, scalar_prefetch = 1 : i64, scratch_operands = 0 : i64, tpu.core_type = #tpu.core_type<tc>, window_params = [{transform_indices = @transform_0, window_bounds = array<i64: 16, 128>}, {pipeline_mode = #tpu.pipeline_mode<synchronous>, transform_indices = @transform_1, window_bounds = array<i64: 1, 128>}, {pipeline_mode = #tpu.pipeline_mode<synchronous>, transform_indices = @transform_2, window_bounds = array<i64: 1, 128>}, {pipeline_mode = #tpu.pipeline_mode<synchronous>, transform_indices = @transform_3, window_bounds = array<i64: 128, 128>}, {pipeline_mode = #tpu.pipeline_mode<synchronous>, transform_indices = @transform_4, window_bounds = array<i64: 1, 128>}, {transform_indices = @transform_5, window_bounds = array<i64: 16, 128>}]} {
    %c0 = arith.constant 0 : index
    %c0_0 = arith.constant 0 : index
    %0 = vector.load %arg2[%c0, %c0_0] : memref<16x128xf32, #tpu.memory_space<vmem>>, vector<16x128xf32>
    %cst = arith.constant dense<0.000000e+00> : vector<16xf32>
    %1 = vector.multi_reduction <add>, %0, %cst [1] : vector<16x128xf32> to vector<16xf32>
    %2 = vector.shape_cast %1 : vector<16xf32> to vector<16x1xf32>
    %cst_1 = arith.constant 1.280000e+02 : f32
    %3 = vector.broadcast %cst_1 : f32 to vector<16x1xf32>
    %4 = arith.divf %2, %3 : vector<16x1xf32>
    %5 = vector.broadcast %4 : vector<16x1xf32> to vector<16x128xf32>
    %6 = arith.subf %0, %5 : vector<16x128xf32>
    %7 = arith.mulf %6, %6 : vector<16x128xf32>
    %cst_2 = arith.constant dense<0.000000e+00> : vector<16xf32>
    %8 = vector.multi_reduction <add>, %7, %cst_2 [1] : vector<16x128xf32> to vector<16xf32>
    %9 = vector.shape_cast %8 : vector<16xf32> to vector<16x1xf32>
    %cst_3 = arith.constant 1.270000e+02 : f32
    %10 = vector.broadcast %cst_3 : f32 to vector<16x1xf32>
    %11 = arith.divf %9, %10 : vector<16x1xf32>
    %12 = math.sqrt %11 : vector<16x1xf32>
    %cst_4 = arith.constant 9.99999997E-7 : f32
    %13 = vector.broadcast %cst_4 : f32 to vector<16x1xf32>
    %14 = arith.addf %12, %13 : vector<16x1xf32>
    %cst_5 = arith.constant 1.000000e+00 : f32
    %15 = vector.broadcast %cst_5 : f32 to vector<16x1xf32>
    %16 = arith.divf %15, %14 : vector<16x1xf32>
    %c0_6 = arith.constant 0 : index
    %c0_7 = arith.constant 0 : index
    %17 = vector.load %arg3[%c0_6, %c0_7] : memref<1x128xf32, #tpu.memory_space<vmem>>, vector<1x128xf32>
    %18 = vector.broadcast %16 : vector<16x1xf32> to vector<16x128xf32>
    %19 = arith.mulf %6, %18 : vector<16x128xf32>
    %20 = vector.broadcast %17 : vector<1x128xf32> to vector<16x128xf32>
    %21 = arith.mulf %20, %19 : vector<16x128xf32>
    %c0_8 = arith.constant 0 : index
    %c0_9 = arith.constant 0 : index
    %22 = vector.load %arg4[%c0_8, %c0_9] : memref<1x128xf32, #tpu.memory_space<vmem>>, vector<1x128xf32>
    %23 = vector.broadcast %22 : vector<1x128xf32> to vector<16x128xf32>
    %24 = arith.addf %21, %23 : vector<16x128xf32>
    %25 = arith.truncf %24 : vector<16x128xf32> to vector<16x128xbf16>
    %c0_10 = arith.constant 0 : index
    %c0_11 = arith.constant 0 : index
    %26 = vector.load %arg5[%c0_10, %c0_11] : memref<128x128xbf16, #tpu.memory_space<vmem>>, vector<128x128xbf16>
    %cst_12 = arith.constant dense<0.000000e+00> : vector<16x128xf32>
    %27 = tpu.matmul %25, %26, %cst_12 {dimension_numbers = #tpu.dot_dimension_numbers<[1], [0], [0], [1], [0, 0, 1, 1], [], []>} : vector<16x128xbf16>, vector<128x128xbf16>, vector<16x128xf32> -> vector<16x128xf32>
    %c0_13 = arith.constant 0 : index
    %c0_14 = arith.constant 0 : index
    %28 = vector.load %arg6[%c0_13, %c0_14] : memref<1x128xf32, #tpu.memory_space<vmem>>, vector<1x128xf32>
    %29 = vector.broadcast %28 : vector<1x128xf32> to vector<16x128xf32>
    %30 = arith.addf %27, %29 : vector<16x128xf32>
    %c16_i32 = arith.constant 16 : i32
    %31 = arith.muli %arg0, %c16_i32 : i32
    %32 = tpu.iota {dimensions = array<i32: 0>} : vector<16x128xi32>
    %33 = vector.broadcast %31 : i32 to vector<16x128xi32>
    %34 = arith.addi %33, %32 : vector<16x128xi32>
    %35 = tpu.iota {dimensions = array<i32: 1>} : vector<16x128xi32>
    %c0_15 = arith.constant 0 : index
    %36 = memref.load %arg1[%c0_15] : memref<1xi32, #tpu.memory_space<smem>>
    %c-1640531527_i32 = arith.constant -1640531527 : i32
    %37 = arith.muli %36, %c-1640531527_i32 : i32
    %c128_i32 = arith.constant 128 : i32
    %38 = vector.broadcast %c128_i32 : i32 to vector<16x128xi32>
    %39 = arith.muli %34, %38 : vector<16x128xi32>
    %40 = vector.broadcast %37 : i32 to vector<16x128xi32>
    %41 = arith.addi %40, %39 : vector<16x128xi32>
    %42 = arith.addi %41, %35 : vector<16x128xi32>
    %c16_i32_16 = arith.constant 16 : i32
    %43 = vector.broadcast %c16_i32_16 : i32 to vector<16x128xi32>
    %44 = arith.shrsi %42, %43 : vector<16x128xi32>
    %c65535_i32 = arith.constant 65535 : i32
    %45 = vector.broadcast %c65535_i32 : i32 to vector<16x128xi32>
    %46 = arith.andi %44, %45 : vector<16x128xi32>
    %47 = arith.xori %42, %46 : vector<16x128xi32>
    %c-2048144789_i32 = arith.constant -2048144789 : i32
    %48 = vector.broadcast %c-2048144789_i32 : i32 to vector<16x128xi32>
    %49 = arith.muli %47, %48 : vector<16x128xi32>
    %c13_i32 = arith.constant 13 : i32
    %50 = vector.broadcast %c13_i32 : i32 to vector<16x128xi32>
    %51 = arith.shrsi %49, %50 : vector<16x128xi32>
    %c524287_i32 = arith.constant 524287 : i32
    %52 = vector.broadcast %c524287_i32 : i32 to vector<16x128xi32>
    %53 = arith.andi %51, %52 : vector<16x128xi32>
    %54 = arith.xori %49, %53 : vector<16x128xi32>
    %c-1028477387_i32 = arith.constant -1028477387 : i32
    %55 = vector.broadcast %c-1028477387_i32 : i32 to vector<16x128xi32>
    %56 = arith.muli %54, %55 : vector<16x128xi32>
    %c16_i32_17 = arith.constant 16 : i32
    %57 = vector.broadcast %c16_i32_17 : i32 to vector<16x128xi32>
    %58 = arith.shrsi %56, %57 : vector<16x128xi32>
    %c65535_i32_18 = arith.constant 65535 : i32
    %59 = vector.broadcast %c65535_i32_18 : i32 to vector<16x128xi32>
    %60 = arith.andi %58, %59 : vector<16x128xi32>
    %61 = arith.xori %56, %60 : vector<16x128xi32>
    %c2147483647_i32 = arith.constant 2147483647 : i32
    %62 = vector.broadcast %c2147483647_i32 : i32 to vector<16x128xi32>
    %63 = arith.andi %61, %62 : vector<16x128xi32>
    %c214748364_i32 = arith.constant 214748364 : i32
    %64 = vector.broadcast %c214748364_i32 : i32 to vector<16x128xi32>
    %65 = arith.cmpi sge, %63, %64 : vector<16x128xi32>
    %cst_19 = arith.constant 1.11111116 : f32
    %66 = vector.broadcast %cst_19 : f32 to vector<16x128xf32>
    %67 = arith.mulf %30, %66 : vector<16x128xf32>
    %cst_20 = arith.constant 0.000000e+00 : f32
    %68 = vector.broadcast %cst_20 : f32 to vector<16x128xf32>
    %69 = arith.select %65, %67, %68 : vector<16x128xi1>, vector<16x128xf32>
    %c0_21 = arith.constant 0 : index
    %c0_22 = arith.constant 0 : index
    %70 = vector.load %arg2[%c0_21, %c0_22] : memref<16x128xf32, #tpu.memory_space<vmem>>, vector<16x128xf32>
    %71 = arith.addf %70, %69 : vector<16x128xf32>
    %c0_23 = arith.constant 0 : index
    %c0_24 = arith.constant 0 : index
    %72 = vector.load %arg7[%c0_23, %c0_24] : memref<16x128xf32, #tpu.memory_space<vmem>>, vector<16x128xf32>
    tpu.vector_store %arg7[%c0_23, %c0_24], %71 {strides = array<i32>} : memref<16x128xf32, #tpu.memory_space<vmem>>, vector<16x128xf32>,
    return
  }
  func.func @transform_0(%arg0: i32, %arg1: memref<1xi32, #tpu.memory_space<smem>>) -> (i32, i32) {
    %c0_i32 = arith.constant 0 : i32
    %c0_i32_0 = arith.constant 0 : i32
    return %arg0, %c0_i32 : i32, i32
  }
  func.func @transform_1(%arg0: i32, %arg1: memref<1xi32, #tpu.memory_space<smem>>) -> (i32, i32) {
    %c0_i32 = arith.constant 0 : i32
    %c0_i32_0 = arith.constant 0 : i32
    %c0_i32_1 = arith.constant 0 : i32
    return %c0_i32, %c0_i32_0 : i32, i32
  }
  func.func @transform_2(%arg0: i32, %arg1: memref<1xi32, #tpu.memory_space<smem>>) -> (i32, i32) {
    %c0_i32 = arith.constant 0 : i32
    %c0_i32_0 = arith.constant 0 : i32
    %c0_i32_1 = arith.constant 0 : i32
    return %c0_i32, %c0_i32_0 : i32, i32
  }
  func.func @transform_3(%arg0: i32, %arg1: memref<1xi32, #tpu.memory_space<smem>>) -> (i32, i32) {
    %c0_i32 = arith.constant 0 : i32
    %c0_i32_0 = arith.constant 0 : i32
    %c0_i32_1 = arith.constant 0 : i32
    return %c0_i32, %c0_i32_0 : i32, i32
  }
  func.func @transform_4(%arg0: i32, %arg1: memref<1xi32, #tpu.memory_space<smem>>) -> (i32, i32) {
    %c0_i32 = arith.constant 0 : i32
    %c0_i32_0 = arith.constant 0 : i32
    %c0_i32_1 = arith.constant 0 : i32
    return %c0_i32, %c0_i32_0 : i32, i32
  }
  func.func @transform_5(%arg0: i32, %arg1: memref<1xi32, #tpu.memory_space<smem>>) -> (i32, i32) {
    %c0_i32 = arith.constant 0 : i32
    %c0_i32_0 = arith.constant 0 : i32
    return %arg0, %c0_i32 : i32, i32
  }
}

</mosaic_0001>

<llo_original>
// kernel: tpu_custom_call.1
$region0: #{tpu_custom_call.1}
  #allocation0 [shape = 'u32[]', space=smem, size = 0x4, offset = 0x4, fixed_abs, tag = 'smem constant byte address 0x4 - core index']
  #allocation1 [shape = 'u32[144,128]{1,0:T(1,128)}', space=vmem, size = 0x12000, scoped, tag = 'internal scratch']
  #allocation2 [shape = 's32[1]{0}', space=sflag, size = 0x4, scoped, tag = 'scoped memory for tpu_custom_call.1']
  #allocation3 [shape = 's32[1]{0:T(128)S(6)}', space=smem, size = 0x200, scoped, tag = 'prefetched SMEM operand 0']
  %s0 = inlined_call_operand.<no memory space> [shape: s32[1], index: 0, kind: input, shape index: {}]
  %s1 = inlined_call_operand.hbm [shape: f32[16,128], index: 1, kind: input, shape index: {}]
  %s2 = inlined_call_operand.vmem [shape: f32[1,128], index: 2, kind: input, shape index: {}]
  %s3 = inlined_call_operand.vmem [shape: f32[1,128], index: 3, kind: input, shape index: {}]
  %s4 = inlined_call_operand.hbm [shape: bf16[128,128], index: 4, kind: input, shape index: {}]
  %s5 = inlined_call_operand.vmem [shape: f32[1,128], index: 5, kind: input, shape index: {}]
  %s6 = inlined_call_operand.hbm [shape: f32[16,128], index: 6, kind: output, shape index: {}]
  %s7 = sld [smem:[#allocation0]]
  $region38: #{tpu_custom_call.1} parent=0
    _
  %s9 = ssub.s32 1, %s7
  %s10 = scalar_select 0, %s9, %s7
  %11 = sst [smem:[#allocation3]] %s0
  $region1: #{tpu_custom_call.1} parent=0
    #allocation4 [shape = 'u8[8192]{0}', space=vmem, size = 0x2000, scoped, tag = 'input window, operand 1, single buffered']
    #allocation5 [shape = 's32[1]{0}', space=sflag, size = 0x4, scoped, tag = 'scoped memory for tpu_custom_call.1']
    #allocation6 [shape = 's32[1]{0}', space=sflag, size = 0x4, scoped, tag = 'scoped memory for tpu_custom_call.1']
    #allocation7 [shape = 'u8[32768]{0}', space=vmem, size = 0x8000, scoped, tag = 'input window, operand 4, single buffered']
    #allocation8 [shape = 's32[1]{0}', space=sflag, size = 0x4, scoped, tag = 'scoped memory for tpu_custom_call.1']
    #allocation9 [shape = 'u8[8192]{0}', space=vmem, size = 0x2000, scoped, tag = 'output window, operand 0, single buffered']
    %12 = vsyncpa [#allocation5], 0
    %13 = vsyncpa [#allocation8], 0
    %14 = vsyncpa [#allocation6], 0
    // Predicated region
    $region2: #{tpu_custom_call.1} parent=1 // pred_check
      _
    $region3: #{tpu_custom_call.1} parent=1 // pred_check_branch
      %16 = sbr.rel (0) target = $region5
    $region4: #{tpu_custom_call.1} parent=1 // pred_region
      %s18 = ssub.s32 256, 256
      %19 = vsyncadd [#allocation5], %s18
      %s20 = sshll.u32 [#allocation4], 4
      %s21 = int_to_ptr.vmem [resolvable:$true] %s20
      %26 = dma.hbm_to_vmem [thread:$0]  %s1, 256, %s21, [#allocation5], 128, 128, 8
    $region5: #{tpu_custom_call.1} parent=1 // pred_fallthru
      _
    // Predicated region
    $region6: #{tpu_custom_call.1} parent=1 // pred_check
      _
    $region7: #{tpu_custom_call.1} parent=1 // pred_check_branch
      %28 = sbr.rel (0) target = $region9
    $region8: #{tpu_custom_call.1} parent=1 // pred_region
      _
    $region9: #{tpu_custom_call.1} parent=1 // pred_fallthru
      _
    // Predicated region
    $region10: #{tpu_custom_call.1} parent=1 // pred_check
      _
    $region11: #{tpu_custom_call.1} parent=1 // pred_check_branch
      %30 = sbr.rel (0) target = $region13
    $region12: #{tpu_custom_call.1} parent=1 // pred_region
      _
    $region13: #{tpu_custom_call.1} parent=1 // pred_fallthru
      _
    // Predicated region
    $region14: #{tpu_custom_call.1} parent=1 // pred_check
      _
    $region15: #{tpu_custom_call.1} parent=1 // pred_check_branch
      %32 = sbr.rel (0) target = $region17
    $region16: #{tpu_custom_call.1} parent=1 // pred_region
      %s34 = ssub.s32 1024, 1024
      %35 = vsyncadd [#allocation8], %s34
      %s36 = sshll.u32 [#allocation7], 4
      %s37 = int_to_ptr.vmem [resolvable:$true] %s36
      %42 = dma.hbm_to_vmem [thread:$0]  %s4, 1024, %s37, [#allocation8], 64, 64, 4
    $region17: #{tpu_custom_call.1} parent=1 // pred_fallthru
      _
    // Predicated region
    $region18: #{tpu_custom_call.1} parent=1 // pred_check
      _
    $region19: #{tpu_custom_call.1} parent=1 // pred_check_branch
      %44 = sbr.rel (0) target = $region21
    $region20: #{tpu_custom_call.1} parent=1 // pred_region
      _
    $region21: #{tpu_custom_call.1} parent=1 // pred_fallthru
      _
    // Predicated region
    $region22: #{tpu_custom_call.1} parent=1 // pred_check
      _
    $region23: #{tpu_custom_call.1} parent=1 // pred_check_branch
      %46 = sbr.rel (0) target = $region25
    $region24: #{tpu_custom_call.1} parent=1 // pred_region
      %47 = dma.done [#allocation5], 256
    $region25: #{tpu_custom_call.1} parent=1 // pred_fallthru
      _
    // Predicated region
    $region26: #{tpu_custom_call.1} parent=1 // pred_check
      _
    $region27: #{tpu_custom_call.1} parent=1 // pred_check_branch
      %49 = sbr.rel (0) target = $region29
    $region28: #{tpu_custom_call.1} parent=1 // pred_region
      %50 = dma.done [#allocation8], 1024
    $region29: #{tpu_custom_call.1} parent=1 // pred_fallthru
      _
    %v52 = vld [vmem:[#allocation4] sm:$0xff]
    %v53 = vld [vmem:[#allocation4 + $0x8] sm:$0xff]
    %54 = vadd.xlane.f32.xlu0 %v52
    %v55 = vpop.xlane.xlu0 %54
    %56 = vadd.xlane.f32.xlu0 %v53
    %v57 = vpop.xlane.xlu0 %56
    %v58 = vrcp.pop 128.0
    %v59 = vmul.f32 %v55, %v58
    %v60 = vmul.f32 %v57, %v58
    %v61 = vsub.f32 %v52, %v59
    %v62 = vsub.f32 %v53, %v60
    %v63 = vmul.f32 %v61, %v61
    %v64 = vmul.f32 %v62, %v62
    %65 = vadd.xlane.f32.xlu0 %v63
    %v66 = vpop.xlane.xlu0 %65
    %67 = vadd.xlane.f32.xlu0 %v64
    %v68 = vpop.xlane.xlu0 %67
    %v69 = vrcp.pop 127.0
    %v70 = vmul.f32 %v66, %v69
    %v71 = vmul.f32 %v68, %v69
    %v72 = vrsqrt.pop %v70
    %v73 = vmul.f32 %v70, %v72
    %vm74 = vcmp.eq.f32.partialorder %v70, inf
    %v75 = vsel %vm74, %v70, %v73
    %vm76 = vcmp.eq.f32.partialorder %v70, 0.0
    %v77 = vand.u32 %v70, 2147483648
    %v78 = vsel %vm76, %v77, %v75
    %v79 = vrsqrt.pop %v71
    %v80 = vmul.f32 %v71, %v79
    %vm81 = vcmp.eq.f32.partialorder %v71, inf
    %v82 = vsel %vm81, %v71, %v80
    %vm83 = vcmp.eq.f32.partialorder %v71, 0.0
    %v84 = vand.u32 %v71, 2147483648
    %v85 = vsel %vm83, %v84, %v82
    %v86 = vadd.f32 %v78, 1e-06
    %v87 = vadd.f32 %v85, 1e-06
    %v88 = vrcp.pop %v86
    %v89 = vmul.f32 1.0, %v88
    %v90 = vrcp.pop %v87
    %v91 = vmul.f32 1.0, %v90
    %v92 = vld [vmem:[%s2] sm:$0x1]
    %v93 = vmul.f32 %v61, %v89
    %v94 = vmul.f32 %v62, %v91
    %v96 = vlaneseq
    %v97 = vshrl.u32 %v96, 7
    %v98 = vsub.s32 0, %v97
    %v99 = vrot.slane %v92, %v98
    %v101 = vmul.f32 %v99, %v93
    %v102 = vmul.f32 %v99, %v94
    %v103 = vld [vmem:[%s3] sm:$0x1]
    %v105 = vlaneseq
    %v106 = vshrl.u32 %v105, 7
    %v107 = vsub.s32 0, %v106
    %v108 = vrot.slane %v103, %v107
    %v110 = vadd.f32 %v101, %v108
    %v111 = vadd.f32 %v102, %v108
    %v112 = vpack.c.bf16 %v111, %v110
    %v113 = vld [vmem:[#allocation7] sm:$0xf]
    %v114 = vld [vmem:[#allocation7 + $0x4] sm:$0xf]
    %v115 = vld [vmem:[#allocation7 + $0x8] sm:$0xf]
    %v116 = vld [vmem:[#allocation7 + $0xc] sm:$0xf]
    %v117 = vld [vmem:[#allocation7 + $0x10] sm:$0xf]
    %v118 = vld [vmem:[#allocation7 + $0x14] sm:$0xf]
    %v119 = vld [vmem:[#allocation7 + $0x18] sm:$0xf]
    %v120 = vld [vmem:[#allocation7 + $0x1c] sm:$0xf]
    %v121 = vld [vmem:[#allocation7 + $0x20] sm:$0xf]
    %v122 = vld [vmem:[#allocation7 + $0x24] sm:$0xf]
    %v123 = vld [vmem:[#allocation7 + $0x28] sm:$0xf]
    %v124 = vld [vmem:[#allocation7 + $0x2c] sm:$0xf]
    %v125 = vld [vmem:[#allocation7 + $0x30] sm:$0xf]
    %v126 = vld [vmem:[#allocation7 + $0x34] sm:$0xf]
    %v127 = vld [vmem:[#allocation7 + $0x38] sm:$0xf]
    %v128 = vld [vmem:[#allocation7 + $0x3c] sm:$0xf]
    %v129 = vld [vmem:[%s5] sm:$0x1]
    %v131 = vlaneseq
    %v132 = vshrl.u32 %v131, 7
    %v133 = vsub.s32 0, %v132
    %v134 = vrot.slane %v129, %v133
    %v152 = vunpack.c.l.b16 %v113
    %v153 = vunpack.c.l.b16 %v114
    %v154 = vunpack.c.l.b16 %v115
    %v155 = vunpack.c.l.b16 %v116
    %v156 = vunpack.c.l.b16 %v117
    %v157 = vunpack.c.l.b16 %v118
    %v158 = vunpack.c.l.b16 %v119
    %v159 = vunpack.c.l.b16 %v120
    %v160 = vunpack.c.l.b16 %v121
    %v161 = vunpack.c.l.b16 %v122
    %v162 = vunpack.c.l.b16 %v123
    %v163 = vunpack.c.l.b16 %v124
    %v164 = vunpack.c.l.b16 %v125
    %v165 = vunpack.c.l.b16 %v126
    %v166 = vunpack.c.l.b16 %v127
    %v167 = vunpack.c.l.b16 %v128
    %v168 = vpack.c.b16 %v153, %v152
    %v169 = vpack.c.b16 %v155, %v154
    %v170 = vpack.c.b16 %v157, %v156
    %v171 = vpack.c.b16 %v159, %v158
    %v172 = vpack.c.b16 %v161, %v160
    %v173 = vpack.c.b16 %v163, %v162
    %v174 = vpack.c.b16 %v165, %v164
    %v175 = vpack.c.b16 %v167, %v166
    %184 = vmatprep.subr.bf16.mxu0 0
    %185 = vmatpush1.bf16.msra.mxu0 %v168
    %186 = vmatprep.subr.bf16.mxu0 0
    %187 = vmatpush1.bf16.msra.mxu0 %v169
    %188 = vmatprep.subr.bf16.mxu0 0
    %189 = vmatpush1.bf16.msra.mxu0 %v170
    %190 = vmatprep.subr.bf16.mxu0 0
    %191 = vmatpush1.bf16.msra.mxu0 %v171
    %192 = vmatprep.subr.bf16.mxu0 0
    %193 = vmatpush1.bf16.msra.mxu0 %v172
    %194 = vmatprep.subr.bf16.mxu0 0
    %195 = vmatpush1.bf16.msra.mxu0 %v173
    %196 = vmatprep.subr.bf16.mxu0 0
    %197 = vmatpush1.bf16.msra.mxu0 %v174
    %198 = vmatprep.subr.bf16.mxu0 0
    %199 = vmatpush1.bf16.msra.mxu0 %v175
    %200 = vmatprep.subr.bf16.mxu0 0
    %201 = vmatpush1.bf16.msra.mxu0 0
    %202 = vmatprep.subr.bf16.mxu0 0
    %203 = vmatpush1.bf16.msra.mxu0 0
    %204 = vmatprep.subr.bf16.mxu0 0
    %205 = vmatpush1.bf16.msra.mxu0 0
    %206 = vmatprep.subr.bf16.mxu0 0
    %207 = vmatpush1.bf16.msra.mxu0 0
    %208 = vmatprep.subr.bf16.mxu0 0
    %209 = vmatpush1.bf16.msra.mxu0 0
    %210 = vmatprep.subr.bf16.mxu0 0
    %211 = vmatpush1.bf16.msra.mxu0 0
    %212 = vmatprep.subr.bf16.mxu0 0
    %213 = vmatpush1.bf16.msra.mxu0 0
    %214 = vmatprep.subr.bf16.mxu0 0
    %215 = vmatpush1.bf16.msra.mxu0 0
    %216 = vmatprep.mubr.bf16.mxu0 0
    %217 = vmatmul.mubr.bf16.gmra.mrb[0].mxu0 %v112
    %v218 = vpop.f32.mrb[0].mxu0
    %v219 = vadd.f32 %v134, %v218
    %v220 = vpop.f32.mrb[0].mxu0
    %v221 = vpop.f32.mrb[0].mxu0
    %v222 = vadd.f32 %v134, %v221
    %v223 = vpop.f32.mrb[0].mxu0
    %224 = vdwg.mxu0
    %s225 = smul.u32 0, 16
    %v226 = vlaneseq
    %v227 = vshrl.u32 %v226, 7
    %v228 = vadd.s32 %v227, 8
    %v229 = vstv %s225
    %v230 = vadd.s32 %v229, %v227
    %v231 = vadd.s32 %v229, %v228
    %v232 = vlaneseq
    %v233 = vand.u32 %v232, 127
    %s234 = sld [smem:[#allocation3]]
    %s235 = smul.u32 %s234, 2654435769
    %v236 = vmul.u32 %v230, 128
    %v237 = vmul.u32 %v231, 128
    %v238 = vstv %s235
    %v239 = vadd.s32 %v238, %v236
    %v240 = vadd.s32 %v238, %v237
    %v241 = vadd.s32 %v239, %v233
    %v242 = vadd.s32 %v240, %v233
    %v243 = vshra.s32 %v241, 16
    %v244 = vshra.s32 %v242, 16
    %v245 = vand.u32 %v243, 65535
    %v246 = vand.u32 %v244, 65535
    %v247 = vxor.u32 %v241, %v245
    %v248 = vxor.u32 %v242, %v246
    %v249 = vmul.u32 %v247, 2246822507
    %v250 = vmul.u32 %v248, 2246822507
    %v251 = vshra.s32 %v249, 13
    %v252 = vshra.s32 %v250, 13
    %v253 = vand.u32 %v251, 524287
    %v254 = vand.u32 %v252, 524287
    %v255 = vxor.u32 %v249, %v253
    %v256 = vxor.u32 %v250, %v254
    %v257 = vmul.u32 %v255, 3266489909
    %v258 = vmul.u32 %v256, 3266489909
    %v259 = vshra.s32 %v257, 16
    %v260 = vshra.s32 %v258, 16
    %v261 = vand.u32 %v259, 65535
    %v262 = vand.u32 %v260, 65535
    %v263 = vxor.u32 %v257, %v261
    %v264 = vxor.u32 %v258, %v262
    %v265 = vand.u32 %v263, 2147483647
    %v266 = vand.u32 %v264, 2147483647
    %vm267 = vcmp.ge.s32.totalorder %v265, 214748364
    %vm268 = vcmp.ge.s32.totalorder %v266, 214748364
    %v269 = vmul.f32 %v219, 1.1111112
    %v270 = vmul.f32 %v222, 1.1111112
    %v271 = vsel %vm267, %v269, 0.0
    %v272 = vsel %vm268, %v270, 0.0
    %v273 = vadd.f32 %v52, %v271
    %v274 = vadd.f32 %v53, %v272
    %275 = vst [vmem:[#allocation9] sm:$0xff] %v273
    %276 = vst [vmem:[#allocation9 + $0x8] sm:$0xff] %v274
    // Predicated region
    $region30: #{tpu_custom_call.1} parent=1 // pred_check
      _
    $region31: #{tpu_custom_call.1} parent=1 // pred_check_branch
      %278 = sbr.rel (0) target = $region33
    $region32: #{tpu_custom_call.1} parent=1 // pred_region
      %s280 = ssub.s32 256, 256
      %281 = vsyncadd [#allocation6], %s280
      %s282 = sshll.u32 [#allocation9], 4
      %s283 = int_to_ptr.vmem [resolvable:$true] %s282
      %288 = dma.vmem_to_hbm [thread:$0]  %s283, 256, %s6, [#allocation6], 128, 128, 8
    $region33: #{tpu_custom_call.1} parent=1 // pred_fallthru
      _
    // Predicated region
    $region34: #{tpu_custom_call.1} parent=1 // pred_check
      _
    $region35: #{tpu_custom_call.1} parent=1 // pred_check_branch
      %290 = sbr.rel (0) target = $region37
    $region36: #{tpu_custom_call.1} parent=1 // pred_region
      %291 = dma.done [#allocation6], 256
    $region37: #{tpu_custom_call.1} parent=1 // pred_fallthru
      _
    %292 = vsyncpa [#allocation5], 1
    %293 = vsyncpa [#allocation8], 1
    %294 = vsyncpa [#allocation6], 1

</llo_original>
